<compile_context>
chip_gen: v5e
topology: v5e:2x2
jax: 0.10.0
libtpu: 0.0.40
codegen_flags: <defaults>
</compile_context>

<pallas_src>
import functools

import jax
import jax.numpy as jnp
from jax.experimental import pallas as pl
from jax.experimental.pallas import tpu as pltpu


def _round_up(x, m):
    return (x + m - 1) // m * m


def policy_kernel(x_ref, w1_ref, w2_ref, w3_ref, w4_ref, bh_ref, tail_ref, out_ref):
    """One batch tile.

    x_ref:   (TILE_B, n_dims) in the input's native dtype / native HBM layout.
    out_ref: (n_actions, TILE_B) -- batch on the lane axis -> lane-dense stores.
    """
    x = x_ref[...].astype(jnp.float32)                       # torch `x.float()`

    # Layer 1: contract the feature axis of both operands -> (hidden, TILE_B).
    # Batch lives on lanes from here on (hidden=32 would waste 3/4 of every vreg
    # if it were the lane axis). MXU utilization is intrinsically low for 32-wide
    # layers; the kernel is DMA / step-overhead bound, not MXU bound.
    h = jax.lax.dot_general(
        w1_ref[...], x,
        dimension_numbers=(((1,), (1,)), ((), ())),
        preferred_element_type=jnp.float32,
    )
    h = jnp.maximum(h + bh_ref[:, 0:1], 0.0)
    h = jnp.dot(w2_ref[...], h, preferred_element_type=jnp.float32)
    h = jnp.maximum(h + bh_ref[:, 1:2], 0.0)
    h = jnp.dot(w3_ref[...], h, preferred_element_type=jnp.float32)
    h = jnp.maximum(h + bh_ref[:, 2:3], 0.0)

    # Output layer + sigmoid + affine rescale into the action limits.
    y = jnp.dot(w4_ref[...], h, preferred_element_type=jnp.float32) + tail_ref[:, 0:1]
    out = jax.nn.sigmoid(y) * tail_ref[:, 1:2] + tail_ref[:, 2:3]
    out_ref[...] = out.astype(out_ref.dtype)


def _vmem_budget_bytes():
    """Scoped-VMEM budget to request, per TPU generation."""
    kind = ""
    try:
        kind = jax.devices()[0].device_kind.lower()
    except Exception:
        pass
    if "v5 lite" in kind or "v5e" in kind or "v5lite" in kind:
        return 48 << 20        # 128 MiB physical; default scoped limit is only 16 MiB
    if "v6" in kind:
        return 64 << 20        # 128 MiB physical; default scoped limit 32 MiB
    if "v7" in kind or "tpu7" in kind:
        return 30 << 20        # 64 MiB physical: stay well inside it
    return 28 << 20            # unknown generation: conservative


# Rough live-VMEM bytes per batch column (f32):
#   x tile double-buffer   : 2 * 512 B   ((TILE_B, 4) pads its lane dim to 128)
#   out tile double-buffer : 2 *  32 B   ((2, TILE_B) pads sublanes to 8)
#   activations / scratch  :  ~576 B     ((32, TILE_B) f32 intermediates + transpose)
_PER_COL_BYTES = 1664


def _batch_tiling(batch):
    budget = _vmem_budget_bytes()
    cap = int(budget * 0.7) // _PER_COL_BYTES
    cap = max(512, min(32768, (cap // 512) * 512))
    # >= 2 grid steps for large batches so v7x's two TensorCores can both get work
    # along the "parallel" batch axis; small batches use one exact block (fast path,
    # no alignment padding anywhere).
    min_steps = 2 if batch >= 4096 else 1
    n_steps = max(min_steps, pl.cdiv(batch, cap))
    if n_steps == 1:
        tile = batch
    else:
        tile = min(cap, _round_up(pl.cdiv(batch, n_steps), 512))
    return tile, pl.cdiv(batch, tile), budget


@jax.jit
def policy_forward(x, params, limits):
    """x: (B, n_dims). params: torch-style weights (out, in), biases (out,).
    limits: (n_actions, 2) with columns [lo, hi]. Returns (B, n_actions) float32."""
    batch, n_dims = x.shape
    hidden = params["w1"].shape[0]
    n_actions = params["w4"].shape[0]

    lo = limits[:, 0].astype(jnp.float32)
    hi = limits[:, 1].astype(jnp.float32)

    # Consolidated constant buffers (fewer DMA descriptors).
    bh = jnp.stack([params["b1"], params["b2"], params["b3"]], axis=1)    # (hidden, 3)
    tail = jnp.stack([params["b4"], hi - lo, lo], axis=1)                 # (n_actions, 3)

    tile, steps, vmem_limit = _batch_tiling(batch)
    const = lambda i: (0, 0)   # weights / biases stay VMEM-resident across grid steps

    outT = pl.pallas_call(
        policy_kernel,
        out_shape=jax.ShapeDtypeStruct((n_actions, batch), jnp.float32),
        grid=(steps,),
        in_specs=[
            pl.BlockSpec((tile, n_dims), lambda i: (i, 0)),   # x, native layout (streamed)
            pl.BlockSpec((hidden, n_dims), const),            # W1
            pl.BlockSpec((hidden, hidden), const),            # W2
            pl.BlockSpec((hidden, hidden), const),            # W3
            pl.BlockSpec((n_actions, hidden), const),         # W4
            pl.BlockSpec((hidden, 3), const),                 # [b1 b2 b3]
            pl.BlockSpec((n_actions, 3), const),              # [b4, hi-lo, lo]
        ],
        out_specs=pl.BlockSpec((n_actions, tile), lambda i: (0, i)),
        compiler_params=pltpu.CompilerParams(
            dimension_semantics=("parallel",),
            vmem_limit_bytes=vmem_limit,
        ),
    )(x, params["w1"], params["w2"], params["w3"], params["w4"], bh, tail)

    # TODO(synk): the torch forward's `print(out.cpu()...)` host side effect is intentionally omitted.
    # Single tiny (n_actions, B) transpose back to the module's (B, n_actions) convention
    # (fused into this jit; no slice since the grid handles the ragged tail).
    return outT.T


def init_params(key, n_dims, n_actions, hidden_size):
    """Deterministic synthetic init, torch-Linear-like fan-in uniform scaling."""
    def linear(key, fan_in, fan_out):
        k1, k2 = jax.random.split(key)
        bound = 1.0 / jnp.sqrt(jnp.float32(fan_in))
        w = jax.random.uniform(k1, (fan_out, fan_in), jnp.float32, -bound, bound)
        b = jax.random.uniform(k2, (fan_out,), jnp.float32, -bound, bound)
        return w, b

    k1, k2, k3, k4 = jax.random.split(key, 4)
    w1, b1 = linear(k1, n_dims, hidden_size)
    w2, b2 = linear(k2, hidden_size, hidden_size)
    w3, b3 = linear(k3, hidden_size, hidden_size)
    w4, b4 = linear(k4, hidden_size, n_actions)
    return dict(w1=w1, b1=b1, w2=w2, b2=b2, w3=w3, b3=b3, w4=w4, b4=b4)


def _reference(x, params, limits):
    h = jnp.maximum(x.astype(jnp.float32) @ params["w1"].T + params["b1"], 0.0)
    h = jnp.maximum(h @ params["w2"].T + params["b2"], 0.0)
    h = jnp.maximum(h @ params["w3"].T + params["b3"], 0.0)
    y = h @ params["w4"].T + params["b4"]
    lo = limits[:, 0]
    hi = limits[:, 1]
    return jax.nn.sigmoid(y) * (hi - lo) + lo


if __name__ == "__main__":
    n_dims, n_actions, hidden_size = 4, 2, 32
    batch = 2

    key = jax.random.PRNGKey(0)
    kx, kp, kx2 = jax.random.split(key, 3)

    x = jax.random.normal(kx, (batch, n_dims), jnp.float32)
    params = init_params(kp, n_dims, n_actions, hidden_size)
    # Default limits from the module: [[0, 1]] * n_actions -> shape (n_actions, 2).
    limits = jnp.tile(jnp.array([[0.0, 1.0]], jnp.float32), (n_actions, 1))

    # Small-batch path (single exact block).
    out = policy_forward(x, params, limits)
    jax.block_until_ready(out)
    ref_out = _reference(x, params, limits)
    assert out.shape == (batch, n_actions), out.shape
    assert jnp.allclose(out, ref_out, atol=1e-4, rtol=1e-4), (out, ref_out)

    # Larger ragged batch: exercises the multi-step grid and Pallas tail masking.
    batch2 = 5000
    x2 = jax.random.normal(kx2, (batch2, n_dims), jnp.float32)
    out2 = policy_forward(x2, params, limits)
    jax.block_until_ready(out2)
    ref_out2 = _reference(x2, params, limits)
    assert out2.shape == (batch2, n_actions), out2.shape
    assert jnp.allclose(out2, ref_out2, atol=1e-4, rtol=1e-4)

    print("KERNEL_OK")
</pallas_src>

<mosaic_0001>
module attributes {stable_mosaic.version = 11 : i64} {
  func.func @policy_kernel(%arg0: i32, %arg1: memref<2x4xf32, #tpu.memory_space<vmem>>, %arg2: memref<32x4xf32, #tpu.memory_space<vmem>>, %arg3: memref<32x32xf32, #tpu.memory_space<vmem>>, %arg4: memref<32x32xf32, #tpu.memory_space<vmem>>, %arg5: memref<2x32xf32, #tpu.memory_space<vmem>>, %arg6: memref<32x3xf32, #tpu.memory_space<vmem>>, %arg7: memref<2x3xf32, #tpu.memory_space<vmem>>, %arg8: memref<2x2xf32, #tpu.memory_space<vmem>>) attributes {dimension_semantics = [#tpu.dimension_semantics<parallel>], iteration_bounds = array<i64: 1>, scalar_prefetch = 0 : i64, scratch_operands = 0 : i64, tpu.core_type = #tpu.core_type<tc>, window_params = [{transform_indices = @transform_0, window_bounds = array<i64: 2, 4>}, {pipeline_mode = #tpu.pipeline_mode<synchronous>, transform_indices = @transform_1, window_bounds = array<i64: 32, 4>}, {pipeline_mode = #tpu.pipeline_mode<synchronous>, transform_indices = @transform_2, window_bounds = array<i64: 32, 32>}, {pipeline_mode = #tpu.pipeline_mode<synchronous>, transform_indices = @transform_3, window_bounds = array<i64: 32, 32>}, {pipeline_mode = #tpu.pipeline_mode<synchronous>, transform_indices = @transform_4, window_bounds = array<i64: 2, 32>}, {pipeline_mode = #tpu.pipeline_mode<synchronous>, transform_indices = @transform_5, window_bounds = array<i64: 32, 3>}, {pipeline_mode = #tpu.pipeline_mode<synchronous>, transform_indices = @transform_6, window_bounds = array<i64: 2, 3>}, {transform_indices = @transform_7, window_bounds = array<i64: 2, 2>}]} {
    %c0 = arith.constant 0 : index
    %c0_0 = arith.constant 0 : index
    %0 = vector.load %arg1[%c0, %c0_0] : memref<2x4xf32, #tpu.memory_space<vmem>>, vector<2x4xf32>
    %c0_1 = arith.constant 0 : index
    %c0_2 = arith.constant 0 : index
    %1 = vector.load %arg2[%c0_1, %c0_2] : memref<32x4xf32, #tpu.memory_space<vmem>>, vector<32x4xf32>
    %cst = arith.constant dense<0.000000e+00> : vector<32x2xf32>
    %2 = tpu.matmul %1, %0, %cst {dimension_numbers = #tpu.dot_dimension_numbers<[1], [1], [0], [0], [0, 0, 1, 0], [], []>} : vector<32x4xf32>, vector<2x4xf32>, vector<32x2xf32> -> vector<32x2xf32>
    %c0_3 = arith.constant 0 : index
    %c0_4 = arith.constant 0 : index
    %3 = vector.load %arg6[%c0_3, %c0_4] : memref<32x3xf32, #tpu.memory_space<vmem>>, vector<32x1xf32>
    %4 = vector.broadcast %3 : vector<32x1xf32> to vector<32x2xf32>
    %5 = arith.addf %2, %4 : vector<32x2xf32>
    %cst_5 = arith.constant 0.000000e+00 : f32
    %6 = vector.broadcast %cst_5 : f32 to vector<32x2xf32>
    %7 = arith.maximumf %5, %6 : vector<32x2xf32>
    %c0_6 = arith.constant 0 : index
    %c0_7 = arith.constant 0 : index
    %8 = vector.load %arg3[%c0_6, %c0_7] : memref<32x32xf32, #tpu.memory_space<vmem>>, vector<32x32xf32>
    %cst_8 = arith.constant dense<0.000000e+00> : vector<32x2xf32>
    %9 = tpu.matmul %8, %7, %cst_8 {dimension_numbers = #tpu.dot_dimension_numbers<[1], [0], [0], [1], [0, 0, 1, 1], [], []>} : vector<32x32xf32>, vector<32x2xf32>, vector<32x2xf32> -> vector<32x2xf32>
    %c0_9 = arith.constant 0 : index
    %c1 = arith.constant 1 : index
    %10 = vector.load %arg6[%c0_9, %c1] : memref<32x3xf32, #tpu.memory_space<vmem>>, vector<32x1xf32>
    %11 = vector.broadcast %10 : vector<32x1xf32> to vector<32x2xf32>
    %12 = arith.addf %9, %11 : vector<32x2xf32>
    %cst_10 = arith.constant 0.000000e+00 : f32
    %13 = vector.broadcast %cst_10 : f32 to vector<32x2xf32>
    %14 = arith.maximumf %12, %13 : vector<32x2xf32>
    %c0_11 = arith.constant 0 : index
    %c0_12 = arith.constant 0 : index
    %15 = vector.load %arg4[%c0_11, %c0_12] : memref<32x32xf32, #tpu.memory_space<vmem>>, vector<32x32xf32>
    %cst_13 = arith.constant dense<0.000000e+00> : vector<32x2xf32>
    %16 = tpu.matmul %15, %14, %cst_13 {dimension_numbers = #tpu.dot_dimension_numbers<[1], [0], [0], [1], [0, 0, 1, 1], [], []>} : vector<32x32xf32>, vector<32x2xf32>, vector<32x2xf32> -> vector<32x2xf32>
    %c0_14 = arith.constant 0 : index
    %c2 = arith.constant 2 : index
    %17 = vector.load %arg6[%c0_14, %c2] : memref<32x3xf32, #tpu.memory_space<vmem>>, vector<32x1xf32>
    %18 = vector.broadcast %17 : vector<32x1xf32> to vector<32x2xf32>
    %19 = arith.addf %16, %18 : vector<32x2xf32>
    %cst_15 = arith.constant 0.000000e+00 : f32
    %20 = vector.broadcast %cst_15 : f32 to vector<32x2xf32>
    %21 = arith.maximumf %19, %20 : vector<32x2xf32>
    %c0_16 = arith.constant 0 : index
    %c0_17 = arith.constant 0 : index
    %22 = vector.load %arg5[%c0_16, %c0_17] : memref<2x32xf32, #tpu.memory_space<vmem>>, vector<2x32xf32>
    %cst_18 = arith.constant dense<0.000000e+00> : vector<2x2xf32>
    %23 = tpu.matmul %22, %21, %cst_18 {dimension_numbers = #tpu.dot_dimension_numbers<[1], [0], [0], [1], [0, 0, 1, 1], [], []>} : vector<2x32xf32>, vector<32x2xf32>, vector<2x2xf32> -> vector<2x2xf32>
    %c0_19 = arith.constant 0 : index
    %c0_20 = arith.constant 0 : index
    %24 = vector.load %arg7[%c0_19, %c0_20] : memref<2x3xf32, #tpu.memory_space<vmem>>, vector<2x1xf32>
    %25 = vector.broadcast %24 : vector<2x1xf32> to vector<2x2xf32>
    %26 = arith.addf %23, %25 : vector<2x2xf32>
    %27 = arith.negf %26 : vector<2x2xf32>
    %28 = math.exp %27 : vector<2x2xf32>
    %cst_21 = arith.constant 1.000000e+00 : f32
    %29 = vector.broadcast %cst_21 : f32 to vector<2x2xf32>
    %30 = arith.addf %29, %28 : vector<2x2xf32>
    %31 = arith.divf %29, %30 : vector<2x2xf32>
    %c0_22 = arith.constant 0 : index
    %c1_23 = arith.constant 1 : index
    %32 = vector.load %arg7[%c0_22, %c1_23] : memref<2x3xf32, #tpu.memory_space<vmem>>, vector<2x1xf32>
    %33 = vector.broadcast %32 : vector<2x1xf32> to vector<2x2xf32>
    %34 = arith.mulf %31, %33 : vector<2x2xf32>
    %c0_24 = arith.constant 0 : index
    %c2_25 = arith.constant 2 : index
    %35 = vector.load %arg7[%c0_24, %c2_25] : memref<2x3xf32, #tpu.memory_space<vmem>>, vector<2x1xf32>
    %36 = vector.broadcast %35 : vector<2x1xf32> to vector<2x2xf32>
    %37 = arith.addf %34, %36 : vector<2x2xf32>
    %c0_26 = arith.constant 0 : index
    %c0_27 = arith.constant 0 : index
    %38 = vector.load %arg8[%c0_26, %c0_27] : memref<2x2xf32, #tpu.memory_space<vmem>>, vector<2x2xf32>
    tpu.vector_store %arg8[%c0_26, %c0_27], %37 {strides = array<i32>} : memref<2x2xf32, #tpu.memory_space<vmem>>, vector<2x2xf32>,
    return
  }
  func.func @transform_0(%arg0: i32) -> (i32, i32) {
    %c0_i32 = arith.constant 0 : i32
    %c0_i32_0 = arith.constant 0 : i32
    return %arg0, %c0_i32 : i32, i32
  }
  func.func @transform_1(%arg0: i32) -> (i32, i32) {
    %c0_i32 = arith.constant 0 : i32
    %c0_i32_0 = arith.constant 0 : i32
    %c0_i32_1 = arith.constant 0 : i32
    return %c0_i32, %c0_i32_0 : i32, i32
  }
  func.func @transform_2(%arg0: i32) -> (i32, i32) {
    %c0_i32 = arith.constant 0 : i32
    %c0_i32_0 = arith.constant 0 : i32
    %c0_i32_1 = arith.constant 0 : i32
    return %c0_i32, %c0_i32_0 : i32, i32
  }
  func.func @transform_3(%arg0: i32) -> (i32, i32) {
    %c0_i32 = arith.constant 0 : i32
    %c0_i32_0 = arith.constant 0 : i32
    %c0_i32_1 = arith.constant 0 : i32
    return %c0_i32, %c0_i32_0 : i32, i32
  }
  func.func @transform_4(%arg0: i32) -> (i32, i32) {
    %c0_i32 = arith.constant 0 : i32
    %c0_i32_0 = arith.constant 0 : i32
    %c0_i32_1 = arith.constant 0 : i32
    return %c0_i32, %c0_i32_0 : i32, i32
  }
  func.func @transform_5(%arg0: i32) -> (i32, i32) {
    %c0_i32 = arith.constant 0 : i32
    %c0_i32_0 = arith.constant 0 : i32
    %c0_i32_1 = arith.constant 0 : i32
    return %c0_i32, %c0_i32_0 : i32, i32
  }
  func.func @transform_6(%arg0: i32) -> (i32, i32) {
    %c0_i32 = arith.constant 0 : i32
    %c0_i32_0 = arith.constant 0 : i32
    %c0_i32_1 = arith.constant 0 : i32
    return %c0_i32, %c0_i32_0 : i32, i32
  }
  func.func @transform_7(%arg0: i32) -> (i32, i32) {
    %c0_i32 = arith.constant 0 : i32
    %c0_i32_0 = arith.constant 0 : i32
    return %c0_i32, %arg0 : i32, i32
  }
}

</mosaic_0001>

<llo_original>
// kernel: policy_forward.1
$region0: #{policy_forward.1}
  #allocation0 [shape = 'u32[]', space=smem, size = 0x4, offset = 0x4, fixed_abs, tag = 'smem constant byte address 0x4 - core index']
  #allocation1 [shape = 'u32[72,128]{1,0:T(1,128)}', space=vmem, size = 0x9000, scoped, tag = 'internal scratch']
  %s0 = inlined_call_operand.vmem [shape: f32[2,4], index: 0, kind: input, shape index: {}]
  %s1 = inlined_call_operand.vmem [shape: f32[32,4], index: 1, kind: input, shape index: {}]
  %s2 = inlined_call_operand.vmem [shape: f32[32,32], index: 2, kind: input, shape index: {}]
  %s3 = inlined_call_operand.vmem [shape: f32[32,32], index: 3, kind: input, shape index: {}]
  %s4 = inlined_call_operand.vmem [shape: f32[2,32], index: 4, kind: input, shape index: {}]
  %s5 = inlined_call_operand.vmem [shape: f32[32,3], index: 5, kind: input, shape index: {}]
  %s6 = inlined_call_operand.vmem [shape: f32[2,3], index: 6, kind: input, shape index: {}]
  %s7 = inlined_call_operand.vmem [shape: f32[2,2], index: 7, kind: output, shape index: {}]
  %s8 = sld [smem:[#allocation0]]
  $region38: #{policy_forward.1} parent=0
    _
  %s10 = ssub.s32 1, %s8
  %s11 = scalar_select 0, %s10, %s8
  // Predicated region
  $region2: #{policy_forward.1} parent=0 // pred_check
    _
  $region3: #{policy_forward.1} parent=0 // pred_check_branch
    %13 = sbr.rel (0) target = $region5
  $region4: #{policy_forward.1} parent=0 // pred_region
    _
  $region5: #{policy_forward.1} parent=0 // pred_fallthru
    _
  // Predicated region
  $region6: #{policy_forward.1} parent=0 // pred_check
    _
  $region7: #{policy_forward.1} parent=0 // pred_check_branch
    %15 = sbr.rel (0) target = $region9
  $region8: #{policy_forward.1} parent=0 // pred_region
    _
  $region9: #{policy_forward.1} parent=0 // pred_fallthru
    _
  // Predicated region
  $region10: #{policy_forward.1} parent=0 // pred_check
    _
  $region11: #{policy_forward.1} parent=0 // pred_check_branch
    %17 = sbr.rel (0) target = $region13
  $region12: #{policy_forward.1} parent=0 // pred_region
    _
  $region13: #{policy_forward.1} parent=0 // pred_fallthru
    _
  // Predicated region
  $region14: #{policy_forward.1} parent=0 // pred_check
    _
  $region15: #{policy_forward.1} parent=0 // pred_check_branch
    %19 = sbr.rel (0) target = $region17
  $region16: #{policy_forward.1} parent=0 // pred_region
    _
  $region17: #{policy_forward.1} parent=0 // pred_fallthru
    _
  // Predicated region
  $region18: #{policy_forward.1} parent=0 // pred_check
    _
  $region19: #{policy_forward.1} parent=0 // pred_check_branch
    %21 = sbr.rel (0) target = $region21
  $region20: #{policy_forward.1} parent=0 // pred_region
    _
  $region21: #{policy_forward.1} parent=0 // pred_fallthru
    _
  // Predicated region
  $region22: #{policy_forward.1} parent=0 // pred_check
    _
  $region23: #{policy_forward.1} parent=0 // pred_check_branch
    %23 = sbr.rel (0) target = $region25
  $region24: #{policy_forward.1} parent=0 // pred_region
    _
  $region25: #{policy_forward.1} parent=0 // pred_fallthru
    _
  // Predicated region
  $region26: #{policy_forward.1} parent=0 // pred_check
    _
  $region27: #{policy_forward.1} parent=0 // pred_check_branch
    %25 = sbr.rel (0) target = $region29
  $region28: #{policy_forward.1} parent=0 // pred_region
    _
  $region29: #{policy_forward.1} parent=0 // pred_fallthru
    _
  %v26 = vld [vmem:[%s0] sm:$0x3]
  %v27 = vld [vmem:[%s1] sm:$0xff]
  %v28 = vld [vmem:[%s1 + $0x8] sm:$0xff]
  %v29 = vld [vmem:[%s1 + $0x10] sm:$0xff]
  %v30 = vld [vmem:[%s1 + $0x18] sm:$0xff]
  %v31 = vld [vmem:[%s5] sm:$0xff]
  %v32 = vld [vmem:[%s5 + $0x8] sm:$0xff]
  %v33 = vld [vmem:[%s5 + $0x10] sm:$0xff]
  %v34 = vld [vmem:[%s5 + $0x18] sm:$0xff]
  %36 = vset.pattern.permute.xlu0 0
  %37 = vperm.xlu0 %36, %v31
  %v38 = vpop.permute.xlu0 %37
  %41 = vset.pattern.permute.xlu0 0
  %42 = vperm.xlu0 %41, %v32
  %v43 = vpop.permute.xlu0 %42
  %46 = vset.pattern.permute.xlu0 0
  %47 = vperm.xlu0 %46, %v33
  %v48 = vpop.permute.xlu0 %47
  %51 = vset.pattern.permute.xlu0 0
  %52 = vperm.xlu0 %51, %v34
  %v53 = vpop.permute.xlu0 %52
  %vm55 = vcmask 31744
  %v57 = vsel %vm55, %v27, 0
  %v60 = vsel %vm55, %v28, 0
  %v63 = vsel %vm55, %v29, 0
  %v66 = vsel %vm55, %v30, 0
  %v69 = vsel %vm55, %v26, 0
  %71 = vmatpush.xpose.msra.mxu0 0.0
  %72 = vmatpush.xpose.msra.mxu0 0.0
  %73 = vmatpush.xpose.msra.mxu0 0.0
  %74 = vmatpush.xpose.msra.mxu0 0.0
  %75 = vmatpush.xpose.msra.mxu0 0.0
  %76 = vmatpush.xpose.msra.mxu0 0.0
  %77 = vmatpush.xpose.msra.mxu0 0.0
  %78 = vmatpush.xpose.msra.mxu0 0.0
  %79 = vmatpush.xpose.msra.mxu0 0.0
  %80 = vmatpush.xpose.msra.mxu0 0.0
  %81 = vmatpush.xpose.msra.mxu0 0.0
  %82 = vmatpush.xpose.msra.mxu0 0.0
  %83 = vmatpush.xpose.msra.mxu0 0.0
  %84 = vmatpush.xpose.msra.mxu0 0.0
  %85 = vmatpush.xpose.msra.mxu0 0.0
  %86 = vmatpush.xpose.msra.mxu0 %v69
  %87 = vmatmul.f32.gmra.mxu0 %v57
  %v88 = vpop.f32.mrf.mxu0
  %v89 = vadd.f32 %v38, %v88
  %90 = vmatmul.f32.gmra.mxu0 %v60
  %v91 = vpop.f32.mrf.mxu0
  %v92 = vadd.f32 %v43, %v91
  %93 = vmatmul.f32.gmra.mxu0 %v63
  %v94 = vpop.f32.mrf.mxu0
  %v95 = vadd.f32 %v48, %v94
  %96 = vmatmul.f32.gmra.mxu0 %v66
  %v97 = vpop.f32.mrf.mxu0
  %v98 = vadd.f32 %v53, %v97
  %99 = vdwg.mxu0
  %v100 = vmax.f32 %v89, 0.0
  %v101 = vmax.f32 %v92, 0.0
  %v102 = vmax.f32 %v95, 0.0
  %v103 = vmax.f32 %v98, 0.0
  %v104 = vld [vmem:[%s2] sm:$0xff]
  %v105 = vld [vmem:[%s2 + $0x8] sm:$0xff]
  %v106 = vld [vmem:[%s2 + $0x10] sm:$0xff]
  %v107 = vld [vmem:[%s2 + $0x18] sm:$0xff]
  %108 = vset.pattern.permute.xlu0 1
  %109 = vperm.xlu0 %108, %v31
  %v110 = vpop.permute.xlu0 %109
  %112 = vset.pattern.permute.xlu0 1
  %113 = vperm.xlu0 %112, %v32
  %v114 = vpop.permute.xlu0 %113
  %116 = vset.pattern.permute.xlu0 1
  %117 = vperm.xlu0 %116, %v33
  %v118 = vpop.permute.xlu0 %117
  %120 = vset.pattern.permute.xlu0 1
  %121 = vperm.xlu0 %120, %v34
  %v122 = vpop.permute.xlu0 %121
  %vm124 = vcmask 261120
  %v126 = vsel %vm124, %v104, 0
  %v129 = vsel %vm124, %v105, 0
  %v132 = vsel %vm124, %v106, 0
  %v135 = vsel %vm124, %v107, 0
  %137 = vmatpush.msra.mxu0 0.0
  %138 = vmatpush.msra.mxu0 0.0
  %139 = vmatpush.msra.mxu0 0.0
  %140 = vmatpush.msra.mxu0 0.0
  %141 = vmatpush.msra.mxu0 0.0
  %142 = vmatpush.msra.mxu0 0.0
  %143 = vmatpush.msra.mxu0 0.0
  %144 = vmatpush.msra.mxu0 0.0
  %145 = vmatpush.msra.mxu0 0.0
  %146 = vmatpush.msra.mxu0 0.0
  %147 = vmatpush.msra.mxu0 0.0
  %148 = vmatpush.msra.mxu0 0.0
  %149 = vmatpush.msra.mxu0 %v103
  %150 = vmatpush.msra.mxu0 %v102
  %151 = vmatpush.msra.mxu0 %v101
  %152 = vmatpush.msra.mxu0 %v100
  %153 = vmatmul.f32.gmra.mxu0 %v126
  %v154 = vpop.f32.mrf.mxu0
  %v155 = vadd.f32 %v110, %v154
  %156 = vmatmul.f32.gmra.mxu0 %v129
  %v157 = vpop.f32.mrf.mxu0
  %v158 = vadd.f32 %v114, %v157
  %159 = vmatmul.f32.gmra.mxu0 %v132
  %v160 = vpop.f32.mrf.mxu0
  %v161 = vadd.f32 %v118, %v160
  %162 = vmatmul.f32.gmra.mxu0 %v135
  %v163 = vpop.f32.mrf.mxu0
  %v164 = vadd.f32 %v122, %v163
  %165 = vdwg.mxu0
  %v166 = vmax.f32 %v155, 0.0
  %v167 = vmax.f32 %v158, 0.0
  %v168 = vmax.f32 %v161, 0.0
  %v169 = vmax.f32 %v164, 0.0
  %v170 = vld [vmem:[%s3] sm:$0xff]
  %v171 = vld [vmem:[%s3 + $0x8] sm:$0xff]
  %v172 = vld [vmem:[%s3 + $0x10] sm:$0xff]
  %v173 = vld [vmem:[%s3 + $0x18] sm:$0xff]
  %174 = vset.pattern.permute.xlu0 2
  %175 = vperm.xlu0 %174, %v31
  %v176 = vpop.permute.xlu0 %175
  %178 = vset.pattern.permute.xlu0 2
  %179 = vperm.xlu0 %178, %v32
  %v180 = vpop.permute.xlu0 %179
  %182 = vset.pattern.permute.xlu0 2
  %183 = vperm.xlu0 %182, %v33
  %v184 = vpop.permute.xlu0 %183
  %186 = vset.pattern.permute.xlu0 2
  %187 = vperm.xlu0 %186, %v34
  %v188 = vpop.permute.xlu0 %187
  %v191 = vsel %vm124, %v170, 0
  %v194 = vsel %vm124, %v171, 0
  %v197 = vsel %vm124, %v172, 0
  %v200 = vsel %vm124, %v173, 0
  %202 = vmatpush.msra.mxu0 0.0
  %203 = vmatpush.msra.mxu0 0.0
  %204 = vmatpush.msra.mxu0 0.0
  %205 = vmatpush.msra.mxu0 0.0
  %206 = vmatpush.msra.mxu0 0.0
  %207 = vmatpush.msra.mxu0 0.0
  %208 = vmatpush.msra.mxu0 0.0
  %209 = vmatpush.msra.mxu0 0.0
  %210 = vmatpush.msra.mxu0 0.0
  %211 = vmatpush.msra.mxu0 0.0
  %212 = vmatpush.msra.mxu0 0.0
  %213 = vmatpush.msra.mxu0 0.0
  %214 = vmatpush.msra.mxu0 %v169
  %215 = vmatpush.msra.mxu0 %v168
  %216 = vmatpush.msra.mxu0 %v167
  %217 = vmatpush.msra.mxu0 %v166
  %218 = vmatmul.f32.gmra.mxu0 %v191
  %v219 = vpop.f32.mrf.mxu0
  %v220 = vadd.f32 %v176, %v219
  %221 = vmatmul.f32.gmra.mxu0 %v194
  %v222 = vpop.f32.mrf.mxu0
  %v223 = vadd.f32 %v180, %v222
  %224 = vmatmul.f32.gmra.mxu0 %v197
  %v225 = vpop.f32.mrf.mxu0
  %v226 = vadd.f32 %v184, %v225
  %227 = vmatmul.f32.gmra.mxu0 %v200
  %v228 = vpop.f32.mrf.mxu0
  %v229 = vadd.f32 %v188, %v228
  %230 = vdwg.mxu0
  %v231 = vmax.f32 %v220, 0.0
  %v232 = vmax.f32 %v223, 0.0
  %v233 = vmax.f32 %v226, 0.0
  %v234 = vmax.f32 %v229, 0.0
  %v235 = vld [vmem:[%s4] sm:$0x3]
  %v236 = vld [vmem:[%s6] sm:$0x3]
  %238 = vset.pattern.permute.xlu0 0
  %239 = vperm.xlu0 %238, %v236
  %v240 = vpop.permute.xlu0 %239
  %v243 = vsel %vm124, %v235, 0
  %245 = vmatpush.msra.mxu0 0.0
  %246 = vmatpush.msra.mxu0 0.0
  %247 = vmatpush.msra.mxu0 0.0
  %248 = vmatpush.msra.mxu0 0.0
  %249 = vmatpush.msra.mxu0 0.0
  %250 = vmatpush.msra.mxu0 0.0
  %251 = vmatpush.msra.mxu0 0.0
  %252 = vmatpush.msra.mxu0 0.0
  %253 = vmatpush.msra.mxu0 0.0
  %254 = vmatpush.msra.mxu0 0.0
  %255 = vmatpush.msra.mxu0 0.0
  %256 = vmatpush.msra.mxu0 0.0
  %257 = vmatpush.msra.mxu0 %v234
  %258 = vmatpush.msra.mxu0 %v233
  %259 = vmatpush.msra.mxu0 %v232
  %260 = vmatpush.msra.mxu0 %v231
  %261 = vmatmul.f32.gmra.mxu0 %v243
  %v262 = vpop.f32.mrf.mxu0
  %v263 = vadd.f32 %v240, %v262
  %264 = vdwg.mxu0
  %v265 = vxor.u32 %v263, 2147483648
  %v266 = vmul.f32 %v265, 1.442695
  %v267 = vpow.pop %v266
  %v268 = vadd.f32 %v267, 1.0
  %v269 = vrcp.pop %v268
  %v270 = vmul.f32 %v268, %v269
  %v271 = vsub.f32 1.0, %v270
  %v272 = vmul.f32 %v269, %v271
  %v273 = vadd.f32 %v269, %v272
  %vm274 = vweird.f32 %v268
  %vm275 = vweird.f32 %v269
  %vm276 = vmor %vm274, %vm275
  %v277 = vsel %vm276, %v269, %v273
  %v278 = vand.u32 2147483647, %v268
  %vm279 = vcmp.eq.f32.partialorder %v278, 8.507059e+37
  %v280 = vand.u32 %v268, 2147483648
  %v281 = vor.u32 1.1754944e-38, %v280
  %v282 = vsel %vm279, %v281, %v277
  %v283 = vmul.f32 1.0, %v282
  %284 = vset.pattern.permute.xlu0 1
  %285 = vperm.xlu0 %284, %v236
  %v286 = vpop.permute.xlu0 %285
  %v288 = vmul.f32 %v283, %v286
  %289 = vset.pattern.permute.xlu0 2
  %290 = vperm.xlu0 %289, %v236
  %v291 = vpop.permute.xlu0 %290
  %v293 = vadd.f32 %v288, %v291
  %vm294 = vcmask 9216
  %295 = vst.msk [vmem:[%s7] sm:$0x3] %vm294, %v293
  // Predicated region
  $region30: #{policy_forward.1} parent=0 // pred_check
    _
  $region31: #{policy_forward.1} parent=0 // pred_check_branch
    %297 = sbr.rel (0) target = $region33
  $region32: #{policy_forward.1} parent=0 // pred_region
    _
  $region33: #{policy_forward.1} parent=0 // pred_fallthru
    _
  // Predicated region
  $region34: #{policy_forward.1} parent=0 // pred_check
    _
  $region35: #{policy_forward.1} parent=0 // pred_check_branch
    %299 = sbr.rel (0) target = $region37
  $region36: #{policy_forward.1} parent=0 // pred_region
    _
  $region37: #{policy_forward.1} parent=0 // pred_fallthru
    _

</llo_original>
